<compile_context>
chip_gen: v6e
topology: v6e:2x2x1
jax: 0.10.0
libtpu: 0.0.40
codegen_flags: <defaults>
</compile_context>

<pallas_src>
import jax
import jax.numpy as jnp
from jax import lax
from jax.experimental import pallas as pl
from jax.experimental.pallas import tpu as pltpu


def _cdiv(a, b):
    return -(-a // b)


def _default_block_bytes():
    """Pick the streaming block size from the device generation."""
    try:
        kind = jax.devices()[0].device_kind.lower()
    except Exception:
        kind = ""
    # v6e / v7x: 8 MiB blocks (16 MiB double-buffered).  Older chips (and
    # unknown backends) get 4 MiB, which fits v5e's 16 MiB scoped-VMEM default.
    if ("v6" in kind) or ("v7" in kind):
        return 8 << 20
    return 4 << 20


def _make_abs_sum_kernel(n_chunks, tile_chunks, tiles_per_part, acc_split, needs_mask):
    """sum(|x|) over a (n_chunks, sub, lanes) slab into a resident (1, sub, lanes) block."""

    def kernel(x_ref, out_ref):
        p = pl.program_id(0)
        j = pl.program_id(1)

        @pl.when(j == 0)
        def _init():
            out_ref[...] = jnp.zeros_like(out_ref)

        a = jnp.abs(x_ref[...].astype(jnp.float32))  # (tile_chunks, sub, lanes)

        def accumulate(vals):
            # Split the block reduce into acc_split independent partial chains
            # (VPU add-latency hiding), then a short combine into the resident
            # accumulator.  Static leading-dim slices are layout-trivial.
            g = vals.shape[0]
            step = g // acc_split
            part = vals[:step].sum(axis=0, keepdims=True)
            for s in range(1, acc_split):
                part = part + vals[s * step:(s + 1) * step].sum(axis=0, keepdims=True)
            out_ref[...] += part

        if needs_mask:
            start = (p * tiles_per_part + j) * tile_chunks
            valid = n_chunks - start  # chunk-rows of this block holding real data

            @pl.when(valid >= tile_chunks)
            def _full():
                accumulate(a)

            @pl.when(valid < tile_chunks)
            def _ragged():
                row = lax.broadcasted_iota(jnp.int32, a.shape, 0)
                accumulate(jnp.where(row < valid, a, 0.0))
        else:
            accumulate(a)

    return kernel


def mae_loss(pred, labels, *, num_classes, lanes=512, max_block_bytes=None,
             num_parts=1, min_pallas_elems=1 << 20):
    """Mean absolute error between pred [N, C] and one_hot(labels, C).

    Matches torch.nn.L1Loss()(pred, F.one_hot(labels, C).float()).
    num_parts: leading "parallel" grid axis (set 2 on v7x with 2 TensorCores);
    clamped to a divisor of the tile count so no wasted blocks are streamed.
    """
    n, c = pred.shape
    assert c == num_classes
    assert lanes % 128 == 0
    total = n * c

    itemsize = jnp.dtype(pred.dtype).itemsize
    sub = 8 * max(1, 4 // itemsize)          # 8 (f32) / 16 (bf16) / 32 (int8)
    chunk = sub * lanes                      # elements per (sub, lanes) chunk
    n_chunks = total // chunk
    rem = total - n_chunks * chunk

    # ---- small-input fallback: kernel launch + slab plumbing would dominate.
    if n_chunks == 0 or total < min_pallas_elems:
        one_hot = jax.nn.one_hot(labels, num_classes, dtype=jnp.float32)
        return jnp.mean(jnp.abs(pred.astype(jnp.float32) - one_hot))

    # ---- O(N) one-hot correction (plain JAX).  Gather in the native dtype and
    # cast the [N] result (no full f32 copy of pred).  Follows jax.nn.one_hot
    # semantics: out-of-range labels give an all-zero one-hot row.
    # TODO(synk): for small C, XLA may lower this gather as another full pass
    # over pred; fuse it into the Pallas kernel if it shows up in profiles.
    labels_i = labels.astype(jnp.int32)
    in_range = (labels_i >= 0) & (labels_i < c)
    safe = jnp.where(in_range, labels_i, 0)
    p_at = jnp.take_along_axis(pred, safe[:, None], axis=1)[:, 0].astype(jnp.float32)
    corr = jnp.sum(jnp.where(in_range, jnp.abs(p_at - 1.0) - jnp.abs(p_at), 0.0))

    # ---- lane-dense slab, zero-copy when total % chunk == 0.
    flat = pred.reshape(-1)                  # free row-major bitcast
    if rem == 0:
        bulk_flat = flat                     # no wrapper-side copy at all
        tail_sum = jnp.float32(0.0)
    else:
        # <chunk ragged tail summed in plain JAX; the bulk prefix slice below is
        # the one remaining wrapper copy and disappears when total % chunk == 0.
        bulk_flat = flat[: n_chunks * chunk]
        tail = flat[n_chunks * chunk:].astype(jnp.float32)
        tail_sum = jnp.sum(jnp.abs(tail))
    slab = bulk_flat.reshape(n_chunks, sub, lanes)

    # ---- tiling
    if max_block_bytes is None:
        max_block_bytes = _default_block_bytes()
    chunk_bytes = chunk * itemsize
    tile_chunks = max(1, min(n_chunks, max_block_bytes // chunk_bytes))
    acc_split = 4
    if tile_chunks >= acc_split:
        tile_chunks -= tile_chunks % acc_split
    else:
        acc_split = 1
    grid_tiles = _cdiv(n_chunks, tile_chunks)
    needs_mask = (n_chunks % tile_chunks) != 0

    num_parts = max(1, min(int(num_parts), grid_tiles))
    while grid_tiles % num_parts:            # keep only divisors: no phantom blocks
        num_parts -= 1
    tiles_per_part = grid_tiles // num_parts

    in_block_bytes = tile_chunks * chunk_bytes
    out_bytes = sub * lanes * 4

    kernel = _make_abs_sum_kernel(n_chunks, tile_chunks, tiles_per_part,
                                  acc_split, needs_mask)

    partials = pl.pallas_call(
        kernel,
        out_shape=jax.ShapeDtypeStruct((num_parts, sub, lanes), jnp.float32),
        grid_spec=pltpu.PrefetchScalarGridSpec(
            num_scalar_prefetch=0,
            grid=(num_parts, tiles_per_part),
            in_specs=[
                pl.BlockSpec((tile_chunks, sub, lanes),
                             lambda p, j: (p * tiles_per_part + j, 0, 0)),
            ],
            out_specs=pl.BlockSpec((1, sub, lanes), lambda p, j: (p, 0, 0)),
        ),
        compiler_params=pltpu.CompilerParams(
            # Leading axis "parallel" (sharded across the 2 TCs on v7x; harmless
            # serialization on single-TC v5e/v6e).
            # TODO(synk): verify 2-TC sharding on v7x with xprof; switch to
            # pltpu.CORE_PARALLEL if the plain "parallel" axis does not shard.
            dimension_semantics=("parallel", "arbitrary"),
            vmem_limit_bytes=int(max(32 << 20, 2 * in_block_bytes + (8 << 20))),
        ),
        cost_estimate=pl.CostEstimate(
            flops=2 * n_chunks * chunk,
            transcendentals=0,
            bytes_accessed=n_chunks * chunk * itemsize + num_parts * out_bytes,
        ),
    )(slab)

    abs_sum = jnp.sum(partials) + tail_sum
    return (abs_sum + corr) / total


def mae_loss_ref(pred, labels, num_classes):
    one_hot = jax.nn.one_hot(labels, num_classes, dtype=jnp.float32)
    return jnp.mean(jnp.abs(pred.astype(jnp.float32) - one_hot))


if __name__ == "__main__":
    num_classes = 3
    key = jax.random.PRNGKey(0)
    k1, k2, k3, k4, k5, k6, k7, k8 = jax.random.split(key, 8)

    # 1) Module-typical tiny shape -> small-input fallback path.
    pred = jax.random.normal(k1, (16, num_classes), dtype=jnp.float32)
    labels = jax.random.randint(k2, (16,), 0, num_classes, dtype=jnp.int32)
    out = jax.block_until_ready(mae_loss(pred, labels, num_classes=num_classes))
    ref = mae_loss_ref(pred, labels, num_classes)
    assert jnp.allclose(out, ref, atol=1e-6, rtol=1e-6), (out, ref)

    # 2) Kernel path: single block, zero-pad-free slab, ragged (<chunk) JAX tail.
    pred = jax.random.normal(k3, (6000, num_classes), dtype=jnp.float32)
    labels = jax.random.randint(k4, (6000,), 0, num_classes, dtype=jnp.int32)
    out = jax.block_until_ready(
        mae_loss(pred, labels, num_classes=num_classes, min_pallas_elems=0))
    ref = mae_loss_ref(pred, labels, num_classes)
    assert jnp.allclose(out, ref, atol=1e-5, rtol=1e-5), (out, ref)

    # 3) Kernel path with small blocks: multi-step reduction axis, in-kernel
    #    masking of the ragged last block, and a 2-part "parallel" axis.
    pred = jax.random.normal(k5, (82000, num_classes), dtype=jnp.float32)
    labels = jax.random.randint(k6, (82000,), 0, num_classes, dtype=jnp.int32)
    out = jax.block_until_ready(
        mae_loss(pred, labels, num_classes=num_classes, min_pallas_elems=0,
                 max_block_bytes=128 * 1024, num_parts=2))
    ref = mae_loss_ref(pred, labels, num_classes)
    assert jnp.allclose(out, ref, atol=1e-5, rtol=1e-5), (out, ref)

    # 4) bf16 input: dtype-aware sublane packing (16/vreg), f32 accumulation.
    pred = jax.random.normal(k7, (30000, num_classes),
                             dtype=jnp.float32).astype(jnp.bfloat16)
    labels = jax.random.randint(k8, (30000,), 0, num_classes, dtype=jnp.int32)
    out = jax.block_until_ready(
        mae_loss(pred, labels, num_classes=num_classes, min_pallas_elems=0))
    ref = mae_loss_ref(pred, labels, num_classes)
    assert jnp.allclose(out, ref, atol=1e-4, rtol=1e-4), (out, ref)

    print("KERNEL_OK")
</pallas_src>

<mosaic_0001>
module attributes {stable_mosaic.version = 11 : i64} {
  func.func @kernel(%arg0: i32, %arg1: i32, %arg2: memref<4x8x512xf32, #tpu.memory_space<vmem>>, %arg3: memref<1x8x512xf32, #tpu.memory_space<vmem>>) attributes {dimension_semantics = [#tpu.dimension_semantics<parallel>, #tpu.dimension_semantics<arbitrary>], iteration_bounds = array<i64: 1, 1>, scalar_prefetch = 0 : i64, scratch_operands = 0 : i64, tpu.core_type = #tpu.core_type<tc>, window_params = [{transform_indices = @transform_0, window_bounds = array<i64: 4, 8, 512>}, {transform_indices = @transform_1, window_bounds = array<i64: 1, 8, 512>}]} {
    %c0_i32 = arith.constant 0 : i32
    %0 = arith.cmpi eq, %arg1, %c0_i32 : i32
    %1 = arith.extui %0 : i1 to i32
    %c0_i32_0 = arith.constant 0 : i32
    %2 = arith.cmpi ne, %1, %c0_i32_0 : i32
    scf.if %2 {
      %cst_12 = arith.constant 0.000000e+00 : f32
      %23 = vector.broadcast %cst_12 : f32 to vector<1x8x512xf32>
      %c0_13 = arith.constant 0 : index
      %c0_14 = arith.constant 0 : index
      %c0_15 = arith.constant 0 : index
      %24 = vector.load %arg3[%c0_13, %c0_14, %c0_15] : memref<1x8x512xf32, #tpu.memory_space<vmem>>, vector<1x8x512xf32>
      tpu.vector_store %arg3[%c0_13, %c0_14, %c0_15], %23 {strides = array<i32>} : memref<1x8x512xf32, #tpu.memory_space<vmem>>, vector<1x8x512xf32>,
    } else {
    }
    %c0 = arith.constant 0 : index
    %c0_1 = arith.constant 0 : index
    %c0_2 = arith.constant 0 : index
    %3 = vector.load %arg2[%c0, %c0_1, %c0_2] : memref<4x8x512xf32, #tpu.memory_space<vmem>>, vector<4x8x512xf32>
    %4 = math.absf %3 : vector<4x8x512xf32>
    %5 = vector.extract_strided_slice %4 {offsets = [0, 0, 0], sizes = [1, 8, 512], strides = [1, 1, 1]} : vector<4x8x512xf32> to vector<1x8x512xf32>
    %cst = arith.constant dense<0.000000e+00> : vector<8x512xf32>
    %6 = vector.multi_reduction <add>, %5, %cst [0] : vector<1x8x512xf32> to vector<8x512xf32>
    %7 = vector.shape_cast %6 : vector<8x512xf32> to vector<1x8x512xf32>
    %8 = vector.extract_strided_slice %4 {offsets = [1, 0, 0], sizes = [1, 8, 512], strides = [1, 1, 1]} : vector<4x8x512xf32> to vector<1x8x512xf32>
    %cst_3 = arith.constant dense<0.000000e+00> : vector<8x512xf32>
    %9 = vector.multi_reduction <add>, %8, %cst_3 [0] : vector<1x8x512xf32> to vector<8x512xf32>
    %10 = vector.shape_cast %9 : vector<8x512xf32> to vector<1x8x512xf32>
    %11 = arith.addf %7, %10 : vector<1x8x512xf32>
    %12 = vector.extract_strided_slice %4 {offsets = [2, 0, 0], sizes = [1, 8, 512], strides = [1, 1, 1]} : vector<4x8x512xf32> to vector<1x8x512xf32>
    %cst_4 = arith.constant dense<0.000000e+00> : vector<8x512xf32>
    %13 = vector.multi_reduction <add>, %12, %cst_4 [0] : vector<1x8x512xf32> to vector<8x512xf32>
    %14 = vector.shape_cast %13 : vector<8x512xf32> to vector<1x8x512xf32>
    %15 = arith.addf %11, %14 : vector<1x8x512xf32>
    %16 = vector.extract_strided_slice %4 {offsets = [3, 0, 0], sizes = [1, 8, 512], strides = [1, 1, 1]} : vector<4x8x512xf32> to vector<1x8x512xf32>
    %cst_5 = arith.constant dense<0.000000e+00> : vector<8x512xf32>
    %17 = vector.multi_reduction <add>, %16, %cst_5 [0] : vector<1x8x512xf32> to vector<8x512xf32>
    %18 = vector.shape_cast %17 : vector<8x512xf32> to vector<1x8x512xf32>
    %19 = arith.addf %15, %18 : vector<1x8x512xf32>
    %c0_6 = arith.constant 0 : index
    %c0_7 = arith.constant 0 : index
    %c0_8 = arith.constant 0 : index
    %20 = vector.load %arg3[%c0_6, %c0_7, %c0_8] : memref<1x8x512xf32, #tpu.memory_space<vmem>>, vector<1x8x512xf32>
    %21 = arith.addf %20, %19 : vector<1x8x512xf32>
    %c0_9 = arith.constant 0 : index
    %c0_10 = arith.constant 0 : index
    %c0_11 = arith.constant 0 : index
    %22 = vector.load %arg3[%c0_9, %c0_10, %c0_11] : memref<1x8x512xf32, #tpu.memory_space<vmem>>, vector<1x8x512xf32>
    tpu.vector_store %arg3[%c0_9, %c0_10, %c0_11], %21 {strides = array<i32>} : memref<1x8x512xf32, #tpu.memory_space<vmem>>, vector<1x8x512xf32>,
    return
  }
  func.func @transform_0(%arg0: i32, %arg1: i32) -> (i32, i32, i32) {
    %c1_i32 = arith.constant 1 : i32
    %0 = arith.muli %arg0, %c1_i32 : i32
    %1 = arith.addi %0, %arg1 : i32
    %c0_i32 = arith.constant 0 : i32
    %c0_i32_0 = arith.constant 0 : i32
    %c0_i32_1 = arith.constant 0 : i32
    return %1, %c0_i32, %c0_i32_0 : i32, i32, i32
  }
  func.func @transform_1(%arg0: i32, %arg1: i32) -> (i32, i32, i32) {
    %c0_i32 = arith.constant 0 : i32
    %c0_i32_0 = arith.constant 0 : i32
    %c0_i32_1 = arith.constant 0 : i32
    return %arg0, %c0_i32, %c0_i32_0 : i32, i32, i32
  }
}

</mosaic_0001>

<llo_original>
// kernel: tpu_custom_call.1
$region0: #{tpu_custom_call.1}
  #allocation0 [shape = 'u32[]', space=smem, size = 0x4, offset = 0x4, fixed_abs, tag = 'smem constant byte address 0x4 - core index']
  #allocation1 [shape = 'u32[144,128]{1,0:T(1,128)}', space=vmem, size = 0x12000, scoped, tag = 'internal scratch']
  %s0 = inlined_call_operand.hbm [shape: f32[4,8,512], index: 0, kind: input, shape index: {}]
  %s1 = inlined_call_operand.hbm [shape: f32[1,8,512], index: 1, kind: output, shape index: {}]
  %s2 = sld [smem:[#allocation0]]
  $region22: #{tpu_custom_call.1} parent=0
    _
  %s4 = ssub.s32 1, %s2
  %s5 = scalar_select 0, %s4, %s2
  $region1: #{tpu_custom_call.1} parent=0
    #allocation2 [shape = 'u8[65536]{0}', space=vmem, size = 0x10000, scoped, tag = 'input window, operand 0, single buffered']
    #allocation3 [shape = 's32[1]{0}', space=sflag, size = 0x4, scoped, tag = 'scoped memory for tpu_custom_call.1']
    #allocation4 [shape = 's32[1]{0}', space=sflag, size = 0x4, scoped, tag = 'scoped memory for tpu_custom_call.1']
    #allocation5 [shape = 'u8[16384]{0}', space=vmem, size = 0x4000, scoped, tag = 'output window, operand 0, single buffered']
    %6 = vsyncpa [#allocation3], 0
    %7 = vsyncpa [#allocation4], 0
    // Predicated region
    $region2: #{tpu_custom_call.1} parent=1 // pred_check
      _
    $region3: #{tpu_custom_call.1} parent=1 // pred_check_branch
      %9 = sbr.rel (0) target = $region5
    $region4: #{tpu_custom_call.1} parent=1 // pred_region
      %s10 = sadd.s32 0, 0
      %s11 = smul.u32 4, %s10
      %s13 = ssub.s32 2048, 2048
      %14 = vsyncadd [#allocation3], %s13
      %s15 = smul.addr %s11, 4
      %s16 = smul.addr %s15, 128
      %s17 = scalar_lea.hbm %s0, %s16
      %s18 = sshll.u32 [#allocation2], 4
      %s19 = int_to_ptr.vmem [resolvable:$true] %s18
      %24 = dma.hbm_to_vmem [thread:$0]  %s17, 2048, %s19, [#allocation3], 512, 512, 32
    $region5: #{tpu_custom_call.1} parent=1 // pred_fallthru
      _
    // Predicated region
    $region6: #{tpu_custom_call.1} parent=1 // pred_check
      _
    $region7: #{tpu_custom_call.1} parent=1 // pred_check_branch
      %26 = sbr.rel (0) target = $region9
    $region8: #{tpu_custom_call.1} parent=1 // pred_region
      %27 = dma.done [#allocation3], 2048
    $region9: #{tpu_custom_call.1} parent=1 // pred_fallthru
      _
    %s28 = sadd.s32 0, 0
    %s29 = smul.u32 4, %s28
    %p30 = scmp.eq.s32.totalorder 0, 0
    // Predicated region
    $region10: #{tpu_custom_call.1} parent=1 // pred_check
      %p31 = pneg %p30
    $region11: #{tpu_custom_call.1} parent=1 // pred_check_branch
      %33 = sbr.rel (%p31) target = $region13
    $region12: #{tpu_custom_call.1} parent=1 // pred_region
      %34 = vst [vmem:[#allocation5] sm:$0xff] 0.0
      %35 = vst [vmem:[#allocation5 + $0x8] sm:$0xff] 0.0
      %36 = vst [vmem:[#allocation5 + $0x10] sm:$0xff] 0.0
      %37 = vst [vmem:[#allocation5 + $0x18] sm:$0xff] 0.0
    $region13: #{tpu_custom_call.1} parent=1 // pred_fallthru
      _
    %v38 = vld [vmem:[#allocation2] sm:$0xff]
    %v39 = vld [vmem:[#allocation2 + $0x8] sm:$0xff]
    %v40 = vld [vmem:[#allocation2 + $0x10] sm:$0xff]
    %v41 = vld [vmem:[#allocation2 + $0x18] sm:$0xff]
    %v42 = vld [vmem:[#allocation2 + $0x20] sm:$0xff]
    %v43 = vld [vmem:[#allocation2 + $0x28] sm:$0xff]
    %v44 = vld [vmem:[#allocation2 + $0x30] sm:$0xff]
    %v45 = vld [vmem:[#allocation2 + $0x38] sm:$0xff]
    %v46 = vld [vmem:[#allocation2 + $0x40] sm:$0xff]
    %v47 = vld [vmem:[#allocation2 + $0x48] sm:$0xff]
    %v48 = vld [vmem:[#allocation2 + $0x50] sm:$0xff]
    %v49 = vld [vmem:[#allocation2 + $0x58] sm:$0xff]
    %v50 = vld [vmem:[#allocation2 + $0x60] sm:$0xff]
    %v51 = vld [vmem:[#allocation2 + $0x68] sm:$0xff]
    %v52 = vld [vmem:[#allocation2 + $0x70] sm:$0xff]
    %v53 = vld [vmem:[#allocation2 + $0x78] sm:$0xff]
    %v54 = vand.u32 2147483647, %v38
    %v55 = vand.u32 2147483647, %v39
    %v56 = vand.u32 2147483647, %v40
    %v57 = vand.u32 2147483647, %v41
    %v58 = vand.u32 2147483647, %v42
    %v59 = vand.u32 2147483647, %v43
    %v60 = vand.u32 2147483647, %v44
    %v61 = vand.u32 2147483647, %v45
    %v62 = vand.u32 2147483647, %v46
    %v63 = vand.u32 2147483647, %v47
    %v64 = vand.u32 2147483647, %v48
    %v65 = vand.u32 2147483647, %v49
    %v66 = vand.u32 2147483647, %v50
    %v67 = vand.u32 2147483647, %v51
    %v68 = vand.u32 2147483647, %v52
    %v69 = vand.u32 2147483647, %v53
    %v70 = vadd.f32 %v54, 0.0
    %v71 = vadd.f32 %v55, 0.0
    %v72 = vadd.f32 %v56, 0.0
    %v73 = vadd.f32 %v57, 0.0
    %v74 = vadd.f32 %v58, 0.0
    %v75 = vadd.f32 %v59, 0.0
    %v76 = vadd.f32 %v60, 0.0
    %v77 = vadd.f32 %v61, 0.0
    %v78 = vadd.f32 %v70, %v74
    %v79 = vadd.f32 %v71, %v75
    %v80 = vadd.f32 %v72, %v76
    %v81 = vadd.f32 %v73, %v77
    %v82 = vadd.f32 %v62, 0.0
    %v83 = vadd.f32 %v63, 0.0
    %v84 = vadd.f32 %v64, 0.0
    %v85 = vadd.f32 %v65, 0.0
    %v86 = vadd.f32 %v78, %v82
    %v87 = vadd.f32 %v79, %v83
    %v88 = vadd.f32 %v80, %v84
    %v89 = vadd.f32 %v81, %v85
    %v90 = vadd.f32 %v66, 0.0
    %v91 = vadd.f32 %v67, 0.0
    %v92 = vadd.f32 %v68, 0.0
    %v93 = vadd.f32 %v69, 0.0
    %v94 = vadd.f32 %v86, %v90
    %v95 = vadd.f32 %v87, %v91
    %v96 = vadd.f32 %v88, %v92
    %v97 = vadd.f32 %v89, %v93
    %v98 = vld [vmem:[#allocation5] sm:$0xff]
    %v99 = vld [vmem:[#allocation5 + $0x8] sm:$0xff]
    %v100 = vld [vmem:[#allocation5 + $0x10] sm:$0xff]
    %v101 = vld [vmem:[#allocation5 + $0x18] sm:$0xff]
    %v102 = vadd.f32 %v98, %v94
    %v103 = vadd.f32 %v99, %v95
    %v104 = vadd.f32 %v100, %v96
    %v105 = vadd.f32 %v101, %v97
    %106 = vst [vmem:[#allocation5] sm:$0xff] %v102
    %107 = vst [vmem:[#allocation5 + $0x8] sm:$0xff] %v103
    %108 = vst [vmem:[#allocation5 + $0x10] sm:$0xff] %v104
    %109 = vst [vmem:[#allocation5 + $0x18] sm:$0xff] %v105
    // Predicated region
    $region14: #{tpu_custom_call.1} parent=1 // pred_check
      _
    $region15: #{tpu_custom_call.1} parent=1 // pred_check_branch
      %111 = sbr.rel (0) target = $region17
    $region16: #{tpu_custom_call.1} parent=1 // pred_region
      %s113 = ssub.s32 512, 512
      %114 = vsyncadd [#allocation4], %s113
      %s116 = sshll.u32 [#allocation5], 4
      %s117 = int_to_ptr.vmem [resolvable:$true] %s116
      %119 = dma.vmem_to_hbm [thread:$0]  %s117, 512, %s1, [#allocation4]
    $region17: #{tpu_custom_call.1} parent=1 // pred_fallthru
      _
    // Predicated region
    $region18: #{tpu_custom_call.1} parent=1 // pred_check
      _
    $region19: #{tpu_custom_call.1} parent=1 // pred_check_branch
      %121 = sbr.rel (0) target = $region21
    $region20: #{tpu_custom_call.1} parent=1 // pred_region
      %122 = dma.done [#allocation4], 512
    $region21: #{tpu_custom_call.1} parent=1 // pred_fallthru
      _
    %123 = vsyncpa [#allocation3], 1
    %124 = vsyncpa [#allocation4], 1

</llo_original>
